<compile_context>
chip_gen: v5e
topology: v5e:2x2
jax: 0.10.0
libtpu: 0.0.40
codegen_flags: <defaults>
</compile_context>

<pallas_src>
import functools

import numpy as np
import jax
import jax.numpy as jnp
from jax.experimental import pallas as pl
from jax.experimental.pallas import tpu as pltpu


NEG = -1.0e30  # large finite sentinel for invalid positions (avoid inf arithmetic)


def _round_up(v: int, m: int) -> int:
    return ((v + m - 1) // m) * m


def _cdiv(a: int, b: int) -> int:
    return (a + b - 1) // b


def _conv_relu_maxpool_kernel(lhs_ref, w_ref, t_ref, o_ref, *, seq_chunk: int):
    # lhs_ref: (Nt, S_pad, Kmax*D) bf16   (lane-dense im2col, built in wrapper)
    # w_ref:   (Kmax*D, Co_pad)    bf16   (fused, zero-padded per-bank weight)
    # t_ref:   (S_pad, Co_pad)     f32    (additive bias + validity table)
    # o_ref:   (Nt, Co_pad)        f32
    nt, s_pad, kd = lhs_ref.shape
    co_pad = w_ref.shape[1]
    w = w_ref[...]                                              # resident weight

    run_max = jnp.full((nt, co_pad), jnp.finfo(jnp.float32).min, jnp.float32)
    # Static, chunk-aligned loop over the sequence: caps the live scores slab at
    # (Nt, seq_chunk, Co_pad) f32 regardless of S.
    for c0 in range(0, s_pad, seq_chunk):
        blk = lhs_ref[:, c0:c0 + seq_chunk, :]                  # (Nt, sc, Kmax*D) bf16
        scores = jnp.dot(blk.reshape(nt * seq_chunk, kd), w,
                         preferred_element_type=jnp.float32)    # fat MXU matmul
        scores = scores.reshape(nt, seq_chunk, co_pad)
        scores = scores + t_ref[c0:c0 + seq_chunk, :][None, :, :]  # bias + (-1e30) mask
        run_max = jnp.maximum(run_max, jnp.max(scores, axis=1))
    # ReLU after the max (exact: ReLU is monotone; every bank has >= 1 valid row).
    o_ref[...] = jnp.maximum(run_max, 0.0).astype(o_ref.dtype)


def cnn_encoder_forward(x, conv_weights, conv_biases, kernel_sizes, *,
                        batch_tile: int = 256, max_seq_chunk: int = 512,
                        vmem_limit_bytes: int = 32 * 1024 * 1024):
    """x: (N, S, D) float32.  conv_weights[i]: (Co, K_i, D).  conv_biases[i]: (Co,)."""
    n, s, d = x.shape
    ks = tuple(kernel_sizes)
    kmax = max(ks)
    assert s >= kmax, "sequence length must be >= max kernel size"
    co = conv_weights[0].shape[0]
    co_total = co * len(ks)
    co_pad = _round_up(co_total, 128)        # lane-dense output columns
    kd = kmax * d                            # fat contraction depth (e.g. 160)

    # ---- sequence chunking / padding (multiples of 8 keep reshapes free) ----
    seq_chunk = min(max_seq_chunk, _round_up(s, 8))
    s_pad = _round_up(s, seq_chunk)

    # ---- batch tiling with explicit VMEM budgeting ----
    n_r = _round_up(n, 8)
    nt = min(_round_up(batch_tile, 8), n_r)
    # keep >= 2 grid steps when possible (v7x: 2 TCs split the "parallel" axis,
    # and it lets Pallas pipeline the LHS DMA against compute).
    num_tiles = max(_cdiv(n_r, nt), 2 if n_r >= 16 else 1)
    nt = _round_up(_cdiv(n_r, num_tiles), 8)

    kd_vmem = _round_up(kd, 128)             # lane padding of the LHS last dim

    def _vmem_bytes(tile: int) -> int:
        lhs = 2 * tile * s_pad * kd_vmem * 2           # double-buffered bf16 LHS tile
        outb = 2 * tile * co_pad * 4                   # double-buffered f32 output tile
        scores = 2 * tile * seq_chunk * co_pad * 4     # live scores chunk (+ temps)
        const = 2 * (kd_vmem * co_pad * 2 + s_pad * co_pad * 4)  # weight + table
        return lhs + outb + scores + const

    while nt > 8 and _vmem_bytes(nt) > int(0.75 * vmem_limit_bytes):
        nt = max(8, _round_up(nt // 2, 8))

    n_pad = _round_up(n_r, nt)
    grid = (n_pad // nt,)

    # ---- host/XLA-side prep (runs once, fused by XLA) ----
    # im2col hoisted out of the kernel: zero-pad the sequence so every tap is
    # in-range, then concatenate Kmax shifted views -> lane-dense (N_pad, S_pad, Kmax*D).
    x_p = jnp.pad(x, ((0, n_pad - n), (0, s_pad + kmax - 1 - s), (0, 0)))
    cols = jnp.concatenate([x_p[:, k:k + s_pad, :] for k in range(kmax)], axis=-1)
    cols = cols.astype(jnp.bfloat16)

    # Fused zero-padded weight + additive bias/validity table.
    w_fused = jnp.zeros((kd, co_pad), jnp.float32)
    table = jnp.full((s_pad, co_pad), NEG, jnp.float32)
    for j, (k, w, b) in enumerate(zip(ks, conv_weights, conv_biases)):
        wj = jnp.transpose(w, (1, 2, 0)).reshape(k * d, co)      # (K*D, Co)
        w_fused = w_fused.at[:k * d, j * co:(j + 1) * co].set(wj)
        valid = s - k + 1                                        # L = S - K + 1
        table = table.at[:valid, j * co:(j + 1) * co].set(
            jnp.broadcast_to(b[None, :], (valid, co)))
    w_fused = w_fused.astype(jnp.bfloat16)

    cost = pl.CostEstimate(
        flops=int(2 * n_pad * s_pad * kd * co_pad),
        transcendentals=0,
        bytes_accessed=int(n_pad * s_pad * kd * 2 + kd * co_pad * 2
                           + s_pad * co_pad * 4 + n_pad * co_pad * 4),
    )

    kernel = functools.partial(_conv_relu_maxpool_kernel, seq_chunk=seq_chunk)

    out = pl.pallas_call(
        kernel,
        out_shape=jax.ShapeDtypeStruct((n_pad, co_pad), jnp.float32),
        grid=grid,
        in_specs=[
            pl.BlockSpec((nt, s_pad, kd), lambda i: (i, 0, 0)),   # LHS tile (pipelined)
            pl.BlockSpec((kd, co_pad), lambda i: (0, 0)),         # fused weight (resident)
            pl.BlockSpec((s_pad, co_pad), lambda i: (0, 0)),      # bias/validity table
        ],
        out_specs=pl.BlockSpec((nt, co_pad), lambda i: (i, 0)),
        compiler_params=pltpu.CompilerParams(
            dimension_semantics=("parallel",),     # batch axis -> both TCs on v7x
            vmem_limit_bytes=vmem_limit_bytes,     # explicit budget (v5e default is 16 MiB)
        ),
        cost_estimate=cost,
    )(cols, w_fused, table)

    # Slice off batch padding and lane padding; dropout is identity in eval mode.
    return out[:n, :co_total]


def reference_forward(x, conv_weights, conv_biases, kernel_sizes):
    """Pure-JAX f32 reference with the module's exact math."""
    n, s, d = x.shape
    outs = []
    for k, w, b in zip(kernel_sizes, conv_weights, conv_biases):
        l = s - k + 1
        cols = jnp.stack([x[:, i:i + l, :] for i in range(k)], axis=2).reshape(n, l, k * d)
        wf = w.reshape(w.shape[0], k * d)                     # (Co, K*D)
        scores = jnp.einsum('nlf,cf->nlc', cols, wf) + b[None, None, :]
        outs.append(jnp.max(jax.nn.relu(scores), axis=1))
    return jnp.concatenate(outs, axis=1)


if __name__ == "__main__":
    # Module hyper-parameters (small, consistent with the forward pass).
    embed_num = 100           # unused in forward (no embedding lookup in the module)
    embed_dim = 32            # D
    kernel_num = 8            # Co (filters per kernel size)
    kernel_sizes = (3, 4, 5)  # Ks
    dropout = 0.5             # identity in eval mode

    n, s = 16, 16             # batch, sequence length -> 2 batch tiles of 8

    key = jax.random.PRNGKey(0)
    k_x, *k_params = jax.random.split(key, 1 + 2 * len(kernel_sizes))

    x = jax.random.normal(k_x, (n, s, embed_dim), dtype=jnp.float32)

    conv_weights, conv_biases = [], []
    for i, k in enumerate(kernel_sizes):
        kw, kb = k_params[2 * i], k_params[2 * i + 1]
        fan_in = 1 * k * embed_dim                     # Ci * K * embed_dim
        bound = 1.0 / np.sqrt(fan_in)                  # Conv2d default init range
        w = jax.random.uniform(kw, (kernel_num, k, embed_dim),
                               minval=-bound, maxval=bound, dtype=jnp.float32)
        b = jax.random.uniform(kb, (kernel_num,),
                               minval=-bound, maxval=bound, dtype=jnp.float32)
        conv_weights.append(w)
        conv_biases.append(b)

    out = cnn_encoder_forward(x, conv_weights, conv_biases, kernel_sizes)
    out = jax.block_until_ready(out)
    assert out.shape == (n, kernel_num * len(kernel_sizes))

    # Tight structural check: f32 reference on bf16-rounded operands (same math as
    # the bf16-operand / f32-accumulate MXU matmul).
    xr = x.astype(jnp.bfloat16).astype(jnp.float32)
    wr = [w.astype(jnp.bfloat16).astype(jnp.float32) for w in conv_weights]
    ref_rounded = reference_forward(xr, wr, conv_biases, kernel_sizes)
    np.testing.assert_allclose(np.asarray(out), np.asarray(ref_rounded),
                               rtol=1e-3, atol=1e-3)

    # Loose semantic check against the full-f32 reference (bf16 operand rounding).
    ref_f32 = reference_forward(x, conv_weights, conv_biases, kernel_sizes)
    np.testing.assert_allclose(np.asarray(out), np.asarray(ref_f32),
                               rtol=5e-2, atol=5e-2)

    print("KERNEL_OK")
</pallas_src>

<mosaic_0001>
module attributes {stable_mosaic.version = 11 : i64} {
  func.func @_conv_relu_maxpool_kernel(%arg0: i32, %arg1: memref<8x16x160xbf16, #tpu.memory_space<vmem>>, %arg2: memref<160x128xbf16, #tpu.memory_space<vmem>>, %arg3: memref<16x128xf32, #tpu.memory_space<vmem>>, %arg4: memref<8x128xf32, #tpu.memory_space<vmem>>) attributes {dimension_semantics = [#tpu.dimension_semantics<parallel>], iteration_bounds = array<i64: 2>, scalar_prefetch = 0 : i64, scratch_operands = 0 : i64, tpu.core_type = #tpu.core_type<tc>, window_params = [{transform_indices = @transform_0, window_bounds = array<i64: 8, 16, 160>}, {pipeline_mode = #tpu.pipeline_mode<synchronous>, transform_indices = @transform_1, window_bounds = array<i64: 160, 128>}, {pipeline_mode = #tpu.pipeline_mode<synchronous>, transform_indices = @transform_2, window_bounds = array<i64: 16, 128>}, {transform_indices = @transform_3, window_bounds = array<i64: 8, 128>}]} {
    %c0 = arith.constant 0 : index
    %c0_0 = arith.constant 0 : index
    %0 = vector.load %arg2[%c0, %c0_0] : memref<160x128xbf16, #tpu.memory_space<vmem>>, vector<160x128xbf16>
    %cst = arith.constant -3.40282347E+38 : f32
    %1 = vector.broadcast %cst : f32 to vector<8x128xf32>
    %c0_1 = arith.constant 0 : index
    %c0_2 = arith.constant 0 : index
    %c0_3 = arith.constant 0 : index
    %2 = vector.load %arg1[%c0_1, %c0_2, %c0_3] : memref<8x16x160xbf16, #tpu.memory_space<vmem>>, vector<8x16x160xbf16>
    %3 = vector.shape_cast %2 : vector<8x16x160xbf16> to vector<128x160xbf16>
    %cst_4 = arith.constant dense<0.000000e+00> : vector<128x128xf32>
    %4 = tpu.matmul %3, %0, %cst_4 {dimension_numbers = #tpu.dot_dimension_numbers<[1], [0], [0], [1], [0, 0, 1, 1], [], []>} : vector<128x160xbf16>, vector<160x128xbf16>, vector<128x128xf32> -> vector<128x128xf32>
    %5 = vector.shape_cast %4 : vector<128x128xf32> to vector<8x16x128xf32>
    %c0_5 = arith.constant 0 : index
    %c0_6 = arith.constant 0 : index
    %6 = vector.load %arg3[%c0_5, %c0_6] : memref<16x128xf32, #tpu.memory_space<vmem>>, vector<16x128xf32>
    %7 = vector.shape_cast %6 : vector<16x128xf32> to vector<1x16x128xf32>
    %8 = vector.broadcast %7 : vector<1x16x128xf32> to vector<8x16x128xf32>
    %9 = arith.addf %5, %8 : vector<8x16x128xf32>
    %cst_7 = arith.constant dense<0xFF800000> : vector<8x128xf32>
    %10 = vector.multi_reduction <maximumf>, %9, %cst_7 [1] : vector<8x16x128xf32> to vector<8x128xf32>
    %11 = arith.maximumf %1, %10 : vector<8x128xf32>
    %cst_8 = arith.constant 0.000000e+00 : f32
    %12 = vector.broadcast %cst_8 : f32 to vector<8x128xf32>
    %13 = arith.maximumf %11, %12 : vector<8x128xf32>
    %c0_9 = arith.constant 0 : index
    %c0_10 = arith.constant 0 : index
    %14 = vector.load %arg4[%c0_9, %c0_10] : memref<8x128xf32, #tpu.memory_space<vmem>>, vector<8x128xf32>
    tpu.vector_store %arg4[%c0_9, %c0_10], %13 {strides = array<i32>} : memref<8x128xf32, #tpu.memory_space<vmem>>, vector<8x128xf32>,
    return
  }
  func.func @transform_0(%arg0: i32) -> (i32, i32, i32) {
    %c0_i32 = arith.constant 0 : i32
    %c0_i32_0 = arith.constant 0 : i32
    %c0_i32_1 = arith.constant 0 : i32
    return %arg0, %c0_i32, %c0_i32_0 : i32, i32, i32
  }
  func.func @transform_1(%arg0: i32) -> (i32, i32) {
    %c0_i32 = arith.constant 0 : i32
    %c0_i32_0 = arith.constant 0 : i32
    %c0_i32_1 = arith.constant 0 : i32
    return %c0_i32, %c0_i32_0 : i32, i32
  }
  func.func @transform_2(%arg0: i32) -> (i32, i32) {
    %c0_i32 = arith.constant 0 : i32
    %c0_i32_0 = arith.constant 0 : i32
    %c0_i32_1 = arith.constant 0 : i32
    return %c0_i32, %c0_i32_0 : i32, i32
  }
  func.func @transform_3(%arg0: i32) -> (i32, i32) {
    %c0_i32 = arith.constant 0 : i32
    %c0_i32_0 = arith.constant 0 : i32
    return %arg0, %c0_i32 : i32, i32
  }
}

</mosaic_0001>

<llo_original>
// kernel: tpu_custom_call.1
$region0: #{tpu_custom_call.1}
  #allocation0 [shape = 'u32[]', space=smem, size = 0x4, offset = 0x4, fixed_abs, tag = 'smem constant byte address 0x4 - core index']
  #allocation1 [shape = 'u32[72,128]{1,0:T(1,128)}', space=vmem, size = 0x9000, scoped, tag = 'internal scratch']
  %s0 = inlined_call_operand.hbm [shape: bf16[16,16,160], index: 0, kind: input, shape index: {}]
  %s1 = inlined_call_operand.hbm [shape: bf16[160,128], index: 1, kind: input, shape index: {}]
  %s2 = inlined_call_operand.hbm [shape: f32[16,128], index: 2, kind: input, shape index: {}]
  %s3 = inlined_call_operand.hbm [shape: f32[16,128], index: 3, kind: output, shape index: {}]
  %s4 = sld [smem:[#allocation0]]
  $region57: #{tpu_custom_call.1} parent=0
    _
  %s6 = ssub.s32 1, %s4
  %s7 = scalar_select 0, %s6, %s4
  $region1: #{tpu_custom_call.1} parent=0
    #allocation2 [shape = 'u8[131072]{0}', space=vmem, size = 0x20000, scoped, tag = 'input window, operand 0']
    #allocation3 [shape = 's32[2]{0}', space=sflag, size = 0x8, scoped, tag = 'scoped memory for tpu_custom_call.1']
    #allocation4 [shape = 's32[2]{0}', space=sflag, size = 0x8, scoped, tag = 'scoped memory for tpu_custom_call.1']
    #allocation5 [shape = 'u8[40960]{0}', space=vmem, size = 0xa000, scoped, tag = 'input window, operand 1, single buffered']
    #allocation6 [shape = 's32[1]{0}', space=sflag, size = 0x4, scoped, tag = 'scoped memory for tpu_custom_call.1']
    #allocation7 [shape = 'u8[8192]{0}', space=vmem, size = 0x2000, scoped, tag = 'input window, operand 2, single buffered']
    #allocation8 [shape = 'u8[8192]{0}', space=vmem, size = 0x2000, scoped, tag = 'output window, operand 0']
    %8 = vsyncpa [#allocation3], 0
    %s9 = scalar_lea.sflag [#allocation3], 1
    %10 = vsyncpa %s9, 0
    %11 = vsyncpa [#allocation6], 0
    %12 = vsyncpa [#allocation4], 0
    %s13 = scalar_lea.sflag [#allocation4], 1
    %14 = vsyncpa %s13, 0
    loop: start=0, step=1, limit=4
    $region2: #{tpu_custom_call.1} parent=1 // loop_pre_header
      _
    $region3: #{tpu_custom_call.1} parent=1 // loop_header
      %s16 = sphi 0, %s20
      %p17 = scmp.ge.s32.totalorder %s16, 4
      %s26 = sphi 0, %s28
      %s29 = sphi 0, %s26
      %s30 = sphi 0, %s29
      %s46 = sphi 0, %s30
      %s50 = sphi 0, %s50
      %s52 = sphi 0, %s50
      %s53 = sphi 0, %s52
      %s67 = sphi 0, %s53
      %s71 = sphi 0, %s71
      %s73 = sphi 0, %s71
      %s74 = sphi 0, %s73
      %s88 = sphi 0, %s74
      %s94 = sphi 0, %s96
      %s97 = sphi 0, %s94
      %s98 = sphi 0, %s97
      %s114 = sphi 0, %s98
    $region4: #{tpu_custom_call.1} parent=1 // loop_header_branch
      %19 = sbr.rel (%p17) target = $region8
    $region5: #{tpu_custom_call.1} parent=1 // loop_body
      %s21 = ssub.s32 %s16, 1
      %s22 = ssub.s32 %s16, 2
      %s23 = sadd.s32 %s16, 1
      %s24 = ssub.s32 %s16, %s23
      %p25 = scmp.eq.s32.totalorder %s24, 0
      %s27 = sadd.s32 %s26, 1
      %s28 = scalar_select %p25, %s26, %s27
      %p31 = pneg %p25
      %p32 = scmp.eq.s32.totalorder %s16, 1
      %p33 = por %p31, %p32
      %p34 = scmp.ne.s32.totalorder %s26, %s29
      %p35 = scmp.eq.s32.totalorder %s16, 0
      %p36 = por %p34, %p35
      %p37 = scmp.ne.s32.totalorder %s26, %s29
      %p38 = scmp.eq.s32.totalorder %s21, 1
      %p39 = por %p37, %p38
      %p40 = scmp.ne.s32.totalorder %s29, %s30
      %p41 = scmp.eq.s32.totalorder %s21, 0
      %p42 = por %p40, %p41
      %p43 = scmp.ne.s32.totalorder %s29, %s30
      %p44 = scmp.eq.s32.totalorder %s22, 1
      %p45 = por %p43, %p44
      %p47 = scmp.ne.s32.totalorder %s30, %s46
      %p48 = scmp.eq.s32.totalorder %s22, 0
      %p49 = por %p47, %p48
      %s51 = sadd.s32 %s50, 1
      %p54 = scmp.eq.s32.totalorder %s16, 1
      %p55 = scmp.ne.s32.totalorder %s50, %s52
      %p56 = scmp.eq.s32.totalorder %s16, 0
      %p57 = por %p55, %p56
      %p58 = scmp.ne.s32.totalorder %s50, %s52
      %p59 = scmp.eq.s32.totalorder %s21, 1
      %p60 = por %p58, %p59
      %p61 = scmp.ne.s32.totalorder %s52, %s53
      %p62 = scmp.eq.s32.totalorder %s21, 0
      %p63 = por %p61, %p62
      %p64 = scmp.ne.s32.totalorder %s52, %s53
      %p65 = scmp.eq.s32.totalorder %s22, 1
      %p66 = por %p64, %p65
      %p68 = scmp.ne.s32.totalorder %s53, %s67
      %p69 = scmp.eq.s32.totalorder %s22, 0
      %p70 = por %p68, %p69
      %s72 = sadd.s32 %s71, 1
      %p75 = scmp.eq.s32.totalorder %s16, 1
      %p76 = scmp.ne.s32.totalorder %s71, %s73
      %p77 = scmp.eq.s32.totalorder %s16, 0
      %p78 = por %p76, %p77
      %p79 = scmp.ne.s32.totalorder %s71, %s73
      %p80 = scmp.eq.s32.totalorder %s21, 1
      %p81 = por %p79, %p80
      %p82 = scmp.ne.s32.totalorder %s73, %s74
      %p83 = scmp.eq.s32.totalorder %s21, 0
      %p84 = por %p82, %p83
      %p85 = scmp.ne.s32.totalorder %s73, %s74
      %p86 = scmp.eq.s32.totalorder %s22, 1
      %p87 = por %p85, %p86
      %p89 = scmp.ne.s32.totalorder %s74, %s88
      %p90 = scmp.eq.s32.totalorder %s22, 0
      %p91 = por %p89, %p90
      %s92 = ssub.s32 %s16, %s23
      %p93 = scmp.eq.s32.totalorder %s92, 0
      %s95 = sadd.s32 %s94, 1
      %s96 = scalar_select %p93, %s94, %s95
      %p99 = pneg %p93
      %p100 = scmp.eq.s32.totalorder %s16, 1
      %p101 = por %p99, %p100
      %p102 = scmp.ne.s32.totalorder %s94, %s97
      %p103 = scmp.eq.s32.totalorder %s16, 0
      %p104 = por %p102, %p103
      %p105 = scmp.ne.s32.totalorder %s94, %s97
      %p106 = scmp.eq.s32.totalorder %s21, 1
      %p107 = por %p105, %p106
      %p108 = scmp.ne.s32.totalorder %s97, %s98
      %p109 = scmp.eq.s32.totalorder %s21, 0
      %p110 = por %p108, %p109
      %p111 = scmp.ne.s32.totalorder %s97, %s98
      %p112 = scmp.eq.s32.totalorder %s22, 1
      %p113 = por %p111, %p112
      %p115 = scmp.ne.s32.totalorder %s98, %s114
      %p116 = scmp.eq.s32.totalorder %s22, 0
      %p117 = por %p115, %p116
      %p118 = scmp.le.s32.totalorder 1, %s16
      %p119 = scmp.lt.s32.totalorder %s16, 3
      %p120 = pnand %p118, %p119
      %p121 = pneg %p120
      // Predicated region
      $region9: #{tpu_custom_call.1} parent=5 // pred_check
        _
      $region10: #{tpu_custom_call.1} parent=5 // pred_check_branch
        %123 = sbr.rel (%p120) target = $region12
      $region11: #{tpu_custom_call.1} parent=5 // pred_region
        %s124 = ssub.s32 %s16, 1
        // Predicated region
        $region13: #{tpu_custom_call.1} parent=11 // pred_check
          %p125 = pneg %p63
        $region14: #{tpu_custom_call.1} parent=11 // pred_check_branch
          %127 = sbr.rel (%p125) target = $region16
        $region15: #{tpu_custom_call.1} parent=11 // pred_region
          %129 = vsyncadd [#allocation6], 0
          %s130 = sshll.u32 %s1, 4
          %s131 = int_to_ptr.hbm [resolvable:$true] %s130
          %s132 = sshll.u32 [#allocation5], 4
          %s133 = int_to_ptr.vmem [resolvable:$true] %s132
          %138 = dma.hbm_to_vmem [thread:$0]  %s131, 1280, %s133, [#allocation6], 64, 64, 4
        $region16: #{tpu_custom_call.1} parent=11 // pred_fallthru
          _
        // Predicated region
        $region17: #{tpu_custom_call.1} parent=11 // pred_check
          %p139 = pneg %p84
        $region18: #{tpu_custom_call.1} parent=11 // pred_check_branch
          %141 = sbr.rel (%p139) target = $region20
        $region19: #{tpu_custom_call.1} parent=11 // pred_region
          %143 = vsyncadd [#allocation6], 0
          %s144 = sshll.u32 %s2, 4
          %s145 = int_to_ptr.hbm [resolvable:$true] %s144
          %s146 = sshll.u32 [#allocation7], 4
          %s147 = int_to_ptr.vmem [resolvable:$true] %s146
          %152 = dma.hbm_to_vmem [thread:$0]  %s145, 256, %s147, [#allocation6], 128, 128, 8
        $region20: #{tpu_custom_call.1} parent=11 // pred_fallthru
          _
      $region12: #{tpu_custom_call.1} parent=5 // pred_fallthru
        _
      %p153 = scmp.lt.s32.totalorder %s16, 2
      // Predicated region
      $region21: #{tpu_custom_call.1} parent=5 // pred_check
        %p154 = pneg %p153
      $region22: #{tpu_custom_call.1} parent=5 // pred_check_branch
        %156 = sbr.rel (%p154) target = $region24
      $region23: #{tpu_custom_call.1} parent=5 // pred_region
        // Predicated region
        $region25: #{tpu_custom_call.1} parent=23 // pred_check
          %p157 = pneg %p36
        $region26: #{tpu_custom_call.1} parent=23 // pred_check_branch
          %159 = sbr.rel (%p157) target = $region28
        $region27: #{tpu_custom_call.1} parent=23 // pred_region
          %s160 = sand.u32 %s26, 1
          %s161 = scalar_lea.sflag [#allocation3], %s160
          %s162 = sand.u32 %s26, 1
          %s163 = smul.addr %s162, 128
          %s164 = scalar_lea.vmem [#allocation2], %s163
          %s165 = smul.u32 8, %s16
          %167 = vsyncadd %s161, 0
          %s168 = smul.addr %s165, 4
          %s169 = smul.addr %s168, 4
          %s170 = scalar_lea.hbm %s0, %s169
          %s171 = sshll.u32 %s170, 4
          %s172 = int_to_ptr.hbm [resolvable:$true] %s171
          %s173 = sshll.u32 %s164, 4
          %s174 = int_to_ptr.vmem [resolvable:$true] %s173
          %179 = dma.hbm_to_vmem [thread:$0]  %s172, 2048, %s174, %s161, 128, 128, 8
        $region28: #{tpu_custom_call.1} parent=23 // pred_fallthru
          _
      $region24: #{tpu_custom_call.1} parent=5 // pred_fallthru
        _
      %p180 = scmp.le.s32.totalorder 1, %s16
      %p181 = scmp.lt.s32.totalorder %s16, 3
      %p182 = pnand %p180, %p181
      %p183 = pneg %p182
      // Predicated region
      $region29: #{tpu_custom_call.1} parent=5 // pred_check
        _
      $region30: #{tpu_custom_call.1} parent=5 // pred_check_branch
        %185 = sbr.rel (%p182) target = $region32
      $region31: #{tpu_custom_call.1} parent=5 // pred_region
        %s186 = ssub.s32 %s16, 1
        %s187 = sand.u32 %s29, 1
        %s188 = scalar_lea.sflag [#allocation3], %s187
        %s189 = sand.u32 %s29, 1
        %s190 = smul.addr %s189, 128
        %s191 = scalar_lea.vmem [#allocation2], %s190
        // Predicated region
        $region33: #{tpu_custom_call.1} parent=31 // pred_check
          %p192 = pneg %p42
        $region34: #{tpu_custom_call.1} parent=31 // pred_check_branch
          %194 = sbr.rel (%p192) target = $region36
        $region35: #{tpu_custom_call.1} parent=31 // pred_region
          %196 = dma.done %s188, 2048
        $region36: #{tpu_custom_call.1} parent=31 // pred_fallthru
          _
        // Predicated region
        $region37: #{tpu_custom_call.1} parent=31 // pred_check
          %p197 = pneg %p63
        $region38: #{tpu_custom_call.1} parent=31 // pred_check_branch
          %199 = sbr.rel (%p197) target = $region40
        $region39: #{tpu_custom_call.1} parent=31 // pred_region
          %201 = dma.done [#allocation6], 1280
        $region40: #{tpu_custom_call.1} parent=31 // pred_fallthru
          _
        // Predicated region
        $region41: #{tpu_custom_call.1} parent=31 // pred_check
          %p202 = pneg %p84
        $region42: #{tpu_custom_call.1} parent=31 // pred_check_branch
          %204 = sbr.rel (%p202) target = $region44
        $region43: #{tpu_custom_call.1} parent=31 // pred_region
          %206 = dma.done [#allocation6], 256
        $region44: #{tpu_custom_call.1} parent=31 // pred_fallthru
          _
        %s207 = sand.u32 %s29, 1
        %s208 = scalar_lea.sflag [#allocation3], %s207
        %s209 = sand.u32 %s29, 1
        %s210 = smul.addr %s209, 128
        %s211 = scalar_lea.vmem [#allocation2], %s210
        %p212 = pneg %p42
        %p213 = pneg %p39
        %p214 = pneg %p63
        %p215 = pneg %p60
        %p216 = pneg %p84
        %p217 = pneg %p81
        %p218 = pneg %p110
        %p219 = pneg %p107
        %s220 = sand.u32 %s97, 1
        %s221 = scalar_lea.sflag [#allocation4], %s220
        %s222 = sand.u32 %s97, 1
        %s223 = smul.addr %s222, 8
        %s224 = scalar_lea.vmem [#allocation8], %s223
        %s225 = smul.u32 8, %s21
        %v227 = vld [vmem:[#allocation5] sm:$0xf]
        %v228 = vld [vmem:[#allocation5 + $0x4] sm:$0xf]
        %v229 = vld [vmem:[#allocation5 + $0x8] sm:$0xf]
        %v230 = vld [vmem:[#allocation5 + $0xc] sm:$0xf]
        %v231 = vld [vmem:[#allocation5 + $0x10] sm:$0xf]
        %v232 = vld [vmem:[#allocation5 + $0x14] sm:$0xf]
        %v233 = vld [vmem:[#allocation5 + $0x18] sm:$0xf]
        %v234 = vld [vmem:[#allocation5 + $0x1c] sm:$0xf]
        %v235 = vld [vmem:[#allocation5 + $0x20] sm:$0xf]
        %v236 = vld [vmem:[#allocation5 + $0x24] sm:$0xf]
        %v237 = vld [vmem:[#allocation5 + $0x28] sm:$0xf]
        %v238 = vld [vmem:[#allocation5 + $0x2c] sm:$0xf]
        %v239 = vld [vmem:[#allocation5 + $0x30] sm:$0xf]
        %v240 = vld [vmem:[#allocation5 + $0x34] sm:$0xf]
        %v241 = vld [vmem:[#allocation5 + $0x38] sm:$0xf]
        %v242 = vld [vmem:[#allocation5 + $0x3c] sm:$0xf]
        %v243 = vld [vmem:[#allocation5 + $0x40] sm:$0xf]
        %v244 = vld [vmem:[#allocation5 + $0x44] sm:$0xf]
        %v245 = vld [vmem:[#allocation5 + $0x48] sm:$0xf]
        %v246 = vld [vmem:[#allocation5 + $0x4c] sm:$0xf]
        %v247 = vld [vmem:[%s191] sm:$0xff]
        %v248 = vld [vmem:[%s191 + $0x8] sm:$0xff]
        %v249 = vld [vmem:[%s191 + $0x10] sm:$0xff]
        %v250 = vld [vmem:[%s191 + $0x18] sm:$0xff]
        %v251 = vld [vmem:[%s191 + $0x20] sm:$0xff]
        %v252 = vld [vmem:[%s191 + $0x28] sm:$0xff]
        %v253 = vld [vmem:[%s191 + $0x30] sm:$0xff]
        %v254 = vld [vmem:[%s191 + $0x38] sm:$0xff]
        %v255 = vld [vmem:[%s191 + $0x40] sm:$0xff]
        %v256 = vld [vmem:[%s191 + $0x48] sm:$0xff]
        %v257 = vld [vmem:[%s191 + $0x50] sm:$0xff]
        %v258 = vld [vmem:[%s191 + $0x58] sm:$0xff]
        %v259 = vld [vmem:[%s191 + $0x60] sm:$0xff]
        %v260 = vld [vmem:[%s191 + $0x68] sm:$0xff]
        %v261 = vld [vmem:[%s191 + $0x70] sm:$0xff]
        %v262 = vld [vmem:[%s191 + $0x78] sm:$0xff]
        %v279 = vunpack.c.l.b16 %v247
        %v280 = vunpack.c.h.b16 %v247
        %v281 = vunpack.c.l.b16 %v248
        %v282 = vunpack.c.h.b16 %v248
        %v283 = vunpack.c.l.b16 %v249
        %v284 = vunpack.c.h.b16 %v249
        %v285 = vunpack.c.l.b16 %v250
        %v286 = vunpack.c.h.b16 %v250
        %v287 = vunpack.c.l.b16 %v251
        %v288 = vunpack.c.h.b16 %v251
        %v289 = vunpack.c.l.b16 %v252
        %v290 = vunpack.c.h.b16 %v252
        %v291 = vunpack.c.l.b16 %v253
        %v292 = vunpack.c.h.b16 %v253
        %v293 = vunpack.c.l.b16 %v254
        %v294 = vunpack.c.h.b16 %v254
        %v295 = vunpack.c.l.b16 %v255
        %v296 = vunpack.c.h.b16 %v255
        %v297 = vunpack.c.l.b16 %v256
        %v298 = vunpack.c.h.b16 %v256
        %v299 = vunpack.c.l.b16 %v257
        %v300 = vunpack.c.h.b16 %v257
        %v301 = vunpack.c.l.b16 %v258
        %v302 = vunpack.c.h.b16 %v258
        %v303 = vunpack.c.l.b16 %v259
        %v304 = vunpack.c.h.b16 %v259
        %v305 = vunpack.c.l.b16 %v260
        %v306 = vunpack.c.h.b16 %v260
        %v307 = vunpack.c.l.b16 %v261
        %v308 = vunpack.c.h.b16 %v261
        %v309 = vunpack.c.l.b16 %v262
        %v310 = vunpack.c.h.b16 %v262
        %v311 = vpack.c.b16 %v281, %v279
        %v312 = vpack.c.b16 %v282, %v280
        %v313 = vpack.c.b16 %v285, %v283
        %v314 = vpack.c.b16 %v286, %v284
        %v315 = vpack.c.b16 %v289, %v287
        %v316 = vpack.c.b16 %v290, %v288
        %v317 = vpack.c.b16 %v293, %v291
        %v318 = vpack.c.b16 %v294, %v292
        %v319 = vpack.c.b16 %v297, %v295
        %v320 = vpack.c.b16 %v298, %v296
        %v321 = vpack.c.b16 %v301, %v299
        %v322 = vpack.c.b16 %v302, %v300
        %v323 = vpack.c.b16 %v305, %v303
        %v324 = vpack.c.b16 %v306, %v304
        %v325 = vpack.c.b16 %v309, %v307
        %v326 = vpack.c.b16 %v310, %v308
        %v355 = vunpack.c.l.b16 %v227
        %v356 = vunpack.c.l.b16 %v228
        %v357 = vunpack.c.l.b16 %v229
        %v358 = vunpack.c.l.b16 %v230
        %v359 = vunpack.c.l.b16 %v231
        %v360 = vunpack.c.l.b16 %v232
        %v361 = vunpack.c.l.b16 %v233
        %v362 = vunpack.c.l.b16 %v234
        %v363 = vunpack.c.l.b16 %v235
        %v364 = vunpack.c.l.b16 %v236
        %v365 = vunpack.c.l.b16 %v237
        %v366 = vunpack.c.l.b16 %v238
        %v367 = vunpack.c.l.b16 %v239
        %v368 = vunpack.c.l.b16 %v240
        %v369 = vunpack.c.l.b16 %v241
        %v370 = vunpack.c.l.b16 %v242
        %v371 = vunpack.c.l.b16 %v243
        %v372 = vunpack.c.l.b16 %v244
        %v373 = vunpack.c.l.b16 %v245
        %v374 = vunpack.c.l.b16 %v246
        %v375 = vpack.c.b16 %v356, %v355
        %v376 = vpack.c.b16 %v358, %v357
        %v377 = vpack.c.b16 %v360, %v359
        %v378 = vpack.c.b16 %v362, %v361
        %v379 = vpack.c.b16 %v364, %v363
        %v380 = vpack.c.b16 %v366, %v365
        %v381 = vpack.c.b16 %v368, %v367
        %v382 = vpack.c.b16 %v370, %v369
        %v383 = vpack.c.b16 %v372, %v371
        %v384 = vpack.c.b16 %v374, %v373
        %vm395 = vcmask 261120
        %v397 = vsel %vm395, %v312, 0
        %v400 = vsel %vm395, %v314, 0
        %v403 = vsel %vm395, %v316, 0
        %v406 = vsel %vm395, %v318, 0
        %v409 = vsel %vm395, %v320, 0
        %v412 = vsel %vm395, %v322, 0
        %v415 = vsel %vm395, %v324, 0
        %v418 = vsel %vm395, %v326, 0
        %420 = vmatpush.bf16.msra.mxu0 %v382
        %421 = vmatpush.bf16.msra.mxu0 %v381
        %422 = vmatpush.bf16.msra.mxu0 %v380
        %423 = vmatpush.bf16.msra.mxu0 %v379
        %424 = vmatpush.bf16.msra.mxu0 %v378
        %425 = vmatpush.bf16.msra.mxu0 %v377
        %426 = vmatpush.bf16.msra.mxu0 %v376
        %427 = vmatpush.bf16.msra.mxu0 %v375
        %428 = vmatmul.bf16.gmra.mxu0 %v311
        %v429 = vpop.f32.mrf.mxu0
        %v430 = vadd.f32 0.0, %v429
        %v431 = vpop.f32.mrf.mxu0
        %v432 = vadd.f32 0.0, %v431
        %433 = vmatmul.bf16.gmra.mxu0 %v313
        %v434 = vpop.f32.mrf.mxu0
        %v435 = vadd.f32 0.0, %v434
        %v436 = vpop.f32.mrf.mxu0
        %v437 = vadd.f32 0.0, %v436
        %438 = vmatmul.bf16.gmra.mxu0 %v315
        %v439 = vpop.f32.mrf.mxu0
        %v440 = vadd.f32 0.0, %v439
        %v441 = vpop.f32.mrf.mxu0
        %v442 = vadd.f32 0.0, %v441
        %443 = vmatmul.bf16.gmra.mxu0 %v317
        %v444 = vpop.f32.mrf.mxu0
        %v445 = vadd.f32 0.0, %v444
        %v446 = vpop.f32.mrf.mxu0
        %v447 = vadd.f32 0.0, %v446
        %448 = vmatmul.bf16.gmra.mxu0 %v319
        %v449 = vpop.f32.mrf.mxu0
        %v450 = vadd.f32 0.0, %v449
        %v451 = vpop.f32.mrf.mxu0
        %v452 = vadd.f32 0.0, %v451
        %453 = vmatmul.bf16.gmra.mxu0 %v321
        %v454 = vpop.f32.mrf.mxu0
        %v455 = vadd.f32 0.0, %v454
        %v456 = vpop.f32.mrf.mxu0
        %v457 = vadd.f32 0.0, %v456
        %458 = vmatmul.bf16.gmra.mxu0 %v323
        %v459 = vpop.f32.mrf.mxu0
        %v460 = vadd.f32 0.0, %v459
        %v461 = vpop.f32.mrf.mxu0
        %v462 = vadd.f32 0.0, %v461
        %463 = vmatmul.bf16.gmra.mxu0 %v325
        %v464 = vpop.f32.mrf.mxu0
        %v465 = vadd.f32 0.0, %v464
        %v466 = vpop.f32.mrf.mxu0
        %v467 = vadd.f32 0.0, %v466
        %468 = vdwg.mxu0
        %469 = vmatpush.bf16.msra.mxu0 0
        %470 = vmatpush.bf16.msra.mxu0 0
        %471 = vmatpush.bf16.msra.mxu0 0
        %472 = vmatpush.bf16.msra.mxu0 0
        %473 = vmatpush.bf16.msra.mxu0 0
        %474 = vmatpush.bf16.msra.mxu0 0
        %475 = vmatpush.bf16.msra.mxu0 %v384
        %476 = vmatpush.bf16.msra.mxu0 %v383
        %477 = vmatmul.bf16.gmra.mxu0 %v397
        %v478 = vpop.f32.mrf.mxu0
        %v479 = vadd.f32 %v430, %v478
        %v480 = vpop.f32.mrf.mxu0
        %v481 = vadd.f32 %v432, %v480
        %482 = vmatmul.bf16.gmra.mxu0 %v400
        %v483 = vpop.f32.mrf.mxu0
        %v484 = vadd.f32 %v435, %v483
        %v485 = vpop.f32.mrf.mxu0
        %v486 = vadd.f32 %v437, %v485
        %487 = vmatmul.bf16.gmra.mxu0 %v403
        %v488 = vpop.f32.mrf.mxu0
        %v489 = vadd.f32 %v440, %v488
        %v490 = vpop.f32.mrf.mxu0
        %v491 = vadd.f32 %v442, %v490
        %492 = vmatmul.bf16.gmra.mxu0 %v406
        %v493 = vpop.f32.mrf.mxu0
        %v494 = vadd.f32 %v445, %v493
        %v495 = vpop.f32.mrf.mxu0
        %v496 = vadd.f32 %v447, %v495
        %497 = vmatmul.bf16.gmra.mxu0 %v409
        %v498 = vpop.f32.mrf.mxu0
        %v499 = vadd.f32 %v450, %v498
        %v500 = vpop.f32.mrf.mxu0
        %v501 = vadd.f32 %v452, %v500
        %502 = vmatmul.bf16.gmra.mxu0 %v412
        %v503 = vpop.f32.mrf.mxu0
        %v504 = vadd.f32 %v455, %v503
        %v505 = vpop.f32.mrf.mxu0
        %v506 = vadd.f32 %v457, %v505
        %507 = vmatmul.bf16.gmra.mxu0 %v415
        %v508 = vpop.f32.mrf.mxu0
        %v509 = vadd.f32 %v460, %v508
        %v510 = vpop.f32.mrf.mxu0
        %v511 = vadd.f32 %v462, %v510
        %512 = vmatmul.bf16.gmra.mxu0 %v418
        %v513 = vpop.f32.mrf.mxu0
        %v514 = vadd.f32 %v465, %v513
        %v515 = vpop.f32.mrf.mxu0
        %v516 = vadd.f32 %v467, %v515
        %517 = vdwg.mxu0
        %v518 = vld [vmem:[#allocation7] sm:$0xff]
        %v519 = vld [vmem:[#allocation7 + $0x8] sm:$0xff]
        %v520 = vadd.f32 %v479, %v518
        %v521 = vadd.f32 %v481, %v519
        %v522 = vadd.f32 %v484, %v518
        %v523 = vadd.f32 %v486, %v519
        %v524 = vadd.f32 %v489, %v518
        %v525 = vadd.f32 %v491, %v519
        %v526 = vadd.f32 %v494, %v518
        %v527 = vadd.f32 %v496, %v519
        %v528 = vadd.f32 %v499, %v518
        %v529 = vadd.f32 %v501, %v519
        %v530 = vadd.f32 %v504, %v518
        %v531 = vadd.f32 %v506, %v519
        %v532 = vadd.f32 %v509, %v518
        %v533 = vadd.f32 %v511, %v519
        %v534 = vadd.f32 %v514, %v518
        %v535 = vadd.f32 %v516, %v519
        %v536 = vmax.f32 %v520, %v521
        %v537 = vrot.slane %v536, 4
        %v538 = vmax.f32 %v536, %v537
        %v539 = vrot.slane %v538, 2
        %v540 = vmax.f32 %v538, %v539
        %v541 = vrot.slane %v540, 1
        %v542 = vmax.f32 %v540, %v541
        %v543 = vmax.f32 %v522, %v523
        %v544 = vrot.slane %v543, 4
        %v545 = vmax.f32 %v543, %v544
        %v546 = vrot.slane %v545, 2
        %v547 = vmax.f32 %v545, %v546
        %v548 = vrot.slane %v547, 1
        %v549 = vmax.f32 %v547, %v548
        %v550 = vmax.f32 %v524, %v525
        %v551 = vrot.slane %v550, 4
        %v552 = vmax.f32 %v550, %v551
        %v553 = vrot.slane %v552, 2
        %v554 = vmax.f32 %v552, %v553
        %v555 = vrot.slane %v554, 1
        %v556 = vmax.f32 %v554, %v555
        %v557 = vmax.f32 %v526, %v527
        %v558 = vrot.slane %v557, 4
        %v559 = vmax.f32 %v557, %v558
        %v560 = vrot.slane %v559, 2
        %v561 = vmax.f32 %v559, %v560
        %v562 = vrot.slane %v561, 1
        %v563 = vmax.f32 %v561, %v562
        %v564 = vmax.f32 %v528, %v529
        %v565 = vrot.slane %v564, 4
        %v566 = vmax.f32 %v564, %v565
        %v567 = vrot.slane %v566, 2
        %v568 = vmax.f32 %v566, %v567
        %v569 = vrot.slane %v568, 1
        %v570 = vmax.f32 %v568, %v569
        %v571 = vmax.f32 %v530, %v531
        %v572 = vrot.slane %v571, 4
        %v573 = vmax.f32 %v571, %v572
        %v574 = vrot.slane %v573, 2
        %v575 = vmax.f32 %v573, %v574
        %v576 = vrot.slane %v575, 1
        %v577 = vmax.f32 %v575, %v576
        %v578 = vmax.f32 %v532, %v533
        %v579 = vrot.slane %v578, 4
        %v580 = vmax.f32 %v578, %v579
        %v581 = vrot.slane %v580, 2
        %v582 = vmax.f32 %v580, %v581
        %v583 = vrot.slane %v582, 1
        %v584 = vmax.f32 %v582, %v583
        %v585 = vmax.f32 %v534, %v535
        %v586 = vrot.slane %v585, 4
        %v587 = vmax.f32 %v585, %v586
        %v588 = vrot.slane %v587, 2
        %v589 = vmax.f32 %v587, %v588
        %v590 = vrot.slane %v589, 1
        %v591 = vmax.f32 %v589, %v590
        %v592 = vmax.f32 %v542, -3.4028235e+38
        %v593 = vmax.f32 %v549, -3.4028235e+38
        %v594 = vmax.f32 %v556, -3.4028235e+38
        %v595 = vmax.f32 %v563, -3.4028235e+38
        %v596 = vmax.f32 %v570, -3.4028235e+38
        %v597 = vmax.f32 %v577, -3.4028235e+38
        %v598 = vmax.f32 %v584, -3.4028235e+38
        %v599 = vmax.f32 %v591, -3.4028235e+38
        %v600 = vmax.f32 %v592, 0.0
        %v601 = vmax.f32 %v593, 0.0
        %v602 = vmax.f32 %v594, 0.0
        %v603 = vmax.f32 %v595, 0.0
        %v604 = vmax.f32 %v596, 0.0
        %v605 = vmax.f32 %v597, 0.0
        %v606 = vmax.f32 %v598, 0.0
        %v607 = vmax.f32 %v599, 0.0
        %vm616 = vcmask 1041409
        %v617 = vsel %vm616, %v601, %v600
        %vm618 = vcmask 1042434
        %v619 = vsel %vm618, %v602, %v617
        %vm620 = vcmask 1043459
        %v621 = vsel %vm620, %v603, %v619
        %vm622 = vcmask 1044484
        %v623 = vsel %vm622, %v604, %v621
        %vm624 = vcmask 1045509
        %v625 = vsel %vm624, %v605, %v623
        %vm626 = vcmask 1046534
        %v627 = vsel %vm626, %v606, %v625
        %vm628 = vcmask 1047559
        %v629 = vsel %vm628, %v607, %v627
        %631 = vst [vmem:[%s224] sm:$0xff] %v629
        %s632 = sand.u32 %s97, 1
        %s633 = scalar_lea.sflag [#allocation4], %s632
        %s634 = sand.u32 %s97, 1
        %s635 = smul.addr %s634, 8
        %s636 = scalar_lea.vmem [#allocation8], %s635
        // Predicated region
        $region45: #{tpu_custom_call.1} parent=31 // pred_check
          %p637 = pneg %p107
        $region46: #{tpu_custom_call.1} parent=31 // pred_check_branch
          %639 = sbr.rel (%p637) target = $region48
        $region47: #{tpu_custom_call.1} parent=31 // pred_region
          %641 = vsyncadd %s633, 0
          %s642 = smul.addr %s21, 8
          %s643 = scalar_lea.hbm %s3, %s642
          %s645 = sshll.u32 %s636, 4
          %s646 = int_to_ptr.vmem [resolvable:$true] %s645
          %s647 = sshll.u32 %s643, 4
          %s648 = int_to_ptr.hbm [resolvable:$true] %s647
          %650 = dma.vmem_to_hbm [thread:$0]  %s646, 128, %s648, %s633
        $region48: #{tpu_custom_call.1} parent=31 // pred_fallthru
          _
      $region32: #{tpu_custom_call.1} parent=5 // pred_fallthru
        _
      %p651 = scmp.le.s32.totalorder 2, %s16
      // Predicated region
      $region49: #{tpu_custom_call.1} parent=5 // pred_check
        %p652 = pneg %p651
      $region50: #{tpu_custom_call.1} parent=5 // pred_check_branch
        %654 = sbr.rel (%p652) target = $region52
      $region51: #{tpu_custom_call.1} parent=5 // pred_region
        %s655 = ssub.s32 %s16, 2
        // Predicated region
        $region53: #{tpu_custom_call.1} parent=51 // pred_check
          %p656 = pneg %p113
        $region54: #{tpu_custom_call.1} parent=51 // pred_check_branch
          %658 = sbr.rel (%p656) target = $region56
        $region55: #{tpu_custom_call.1} parent=51 // pred_region
          %s659 = sand.u32 %s98, 1
          %s660 = scalar_lea.sflag [#allocation4], %s659
          %s661 = sand.u32 %s98, 1
          %s662 = smul.addr %s661, 8
          %s663 = scalar_lea.vmem [#allocation8], %s662
          %665 = dma.done %s660, 128
        $region56: #{tpu_custom_call.1} parent=51 // pred_fallthru
          _
      $region52: #{tpu_custom_call.1} parent=5 // pred_fallthru
        _
    $region6: #{tpu_custom_call.1} parent=1 // loop_footer
      %s20 = sadd.s32 1, %s16
    $region7: #{tpu_custom_call.1} parent=1 // loop_footer_branch
      %15 = sbr.rel target = $region3
    $region8: #{tpu_custom_call.1} parent=1 // loop_exit
      _
    %666 = vsyncpa [#allocation3], 1
    %s667 = scalar_lea.sflag [#allocation3], 1
    %668 = vsyncpa %s667, 1
    %669 = vsyncpa [#allocation6], 1
    %670 = vsyncpa [#allocation4], 1
    %s671 = scalar_lea.sflag [#allocation4], 1
    %672 = vsyncpa %s671, 1

</llo_original>
